<compile_context>
chip_gen: v6e
topology: v6e:2x2x1
jax: 0.10.0
libtpu: 0.0.40
codegen_flags: <defaults>
</compile_context>

<pallas_src>
import math

import jax
import jax.numpy as jnp
from jax import lax
from jax.experimental import pallas as pl
from jax.experimental.pallas import tpu as pltpu


def _highway_kernel(x_ref, w_ref, b_ref, wg_ref, bg_ref, o_ref):
    # x_ref: (TM, D), w_ref: (D, D) [PyTorch (out, in) layout],
    # b_ref: (1, D), wg_ref: (1, D), bg_ref: (1,) in SMEM, o_ref: (TM, D)
    x = x_ref[...].astype(jnp.float32)                       # (TM, D)
    w = w_ref[...].astype(jnp.float32)                       # (D, D)
    b = b_ref[...].astype(jnp.float32)                       # (1, D)
    wg = wg_ref[...].astype(jnp.float32)                     # (1, D)
    bg = bg_ref[0]                                           # scalar

    # linear(x) = x @ W^T + b  — contract dim 1 of x with dim 1 of W (MXU,
    # no transpose materialized).
    lin = lax.dot_general(
        x, w, (((1,), (1,)), ((), ())),
        preferred_element_type=jnp.float32) + b
    out = jnp.maximum(lin, 0.0)                              # ReLU

    # gate(x) = sigmoid(x . wg + bg) -> (TM, 1)
    t = jax.nn.sigmoid(jnp.sum(x * wg, axis=-1, keepdims=True) + bg)

    o_ref[...] = (t * out + (1.0 - t) * x).astype(o_ref.dtype)


def _round_up(n, m):
    return ((n + m - 1) // m) * m


def highway_forward(x, W, b, wg, bg, *, block_m=256):
    """Highway network forward.

    x : (..., D)    input
    W : (D, D)      linear weight, PyTorch (out_features, in_features) layout
    b : (D,)        linear bias
    wg: (D,)        gate weight (PyTorch weight of Linear(D, 1), squeezed)
    bg: scalar / (1,) gate bias
    """
    orig_shape = x.shape
    D = orig_shape[-1]
    N = int(math.prod(orig_shape[:-1])) if len(orig_shape) > 1 else 1
    assert W.shape == (D, D)
    assert b.shape == (D,)
    assert wg.shape == (D,)

    xf = x.reshape(N, D)

    # Row-tile size: multiple of 8 sublanes; cap at block_m for large inputs.
    tm = block_m if N >= block_m else _round_up(max(N, 1), 8)
    n_pad = _round_up(N, tm)
    if n_pad != N:
        xf = jnp.pad(xf, ((0, n_pad - N), (0, 0)))

    b2d = b.reshape(1, D)
    wg2d = wg.reshape(1, D)
    bg1 = jnp.asarray(bg, dtype=jnp.float32).reshape(1)

    grid = (n_pad // tm,)

    itemsize = jnp.dtype(x.dtype).itemsize
    cost = pl.CostEstimate(
        flops=2 * n_pad * D * D           # x @ W^T
        + 2 * n_pad * D                   # gate dot
        + 6 * n_pad * D,                  # bias, relu, blend
        transcendentals=n_pad,            # sigmoid
        bytes_accessed=(2 * n_pad * D * itemsize       # x in, y out
                        + D * D * 4 + 3 * D * 4),
    )

    out = pl.pallas_call(
        _highway_kernel,
        out_shape=jax.ShapeDtypeStruct((n_pad, D), x.dtype),
        grid_spec=pltpu.PrefetchScalarGridSpec(
            num_scalar_prefetch=0,
            grid=grid,
            in_specs=[
                pl.BlockSpec((tm, D), lambda i: (i, 0)),     # x row tile
                pl.BlockSpec((D, D), lambda i: (0, 0)),      # W   (resident)
                pl.BlockSpec((1, D), lambda i: (0, 0)),      # b   (resident)
                pl.BlockSpec((1, D), lambda i: (0, 0)),      # wg  (resident)
                pl.BlockSpec(memory_space=pltpu.MemorySpace.SMEM),  # bg scalar
            ],
            out_specs=pl.BlockSpec((tm, D), lambda i: (i, 0)),
        ),
        compiler_params=pltpu.CompilerParams(
            dimension_semantics=("parallel",),
            vmem_limit_bytes=64 << 20,
        ),
        cost_estimate=cost,
    )(xf, W, b2d, wg2d, bg1)

    if n_pad != N:
        out = out[:N]
    return out.reshape(orig_shape)


def init_linear(key, out_features, in_features):
    """Matches PyTorch nn.Linear default init (kaiming-uniform weight,
    uniform bias with bound 1/sqrt(fan_in))."""
    kw, kb = jax.random.split(key)
    bound = 1.0 / math.sqrt(in_features)
    w = jax.random.uniform(kw, (out_features, in_features),
                           minval=-bound, maxval=bound, dtype=jnp.float32)
    b = jax.random.uniform(kb, (out_features,),
                           minval=-bound, maxval=bound, dtype=jnp.float32)
    return w, b


if __name__ == "__main__":
    batch, seq, hidden = 2, 8, 32

    key = jax.random.PRNGKey(0)
    k_x, k_lin, k_gate = jax.random.split(key, 3)

    x = jax.random.normal(k_x, (batch, seq, hidden), dtype=jnp.float32)
    W, b = init_linear(k_lin, hidden, hidden)          # linear: D -> D
    Wg, bg = init_linear(k_gate, 1, hidden)            # gate:   D -> 1
    wg = Wg[0]                                         # (D,)
    bg = bg[0]                                         # scalar

    y = highway_forward(x, W, b, wg, bg)
    y = jax.block_until_ready(y)

    # Pure-JAX reference mirroring the PyTorch module.
    t_ref = jax.nn.sigmoid(jnp.einsum("bsd,d->bs", x, wg)[..., None] + bg)
    lin_ref = jnp.einsum("bsd,od->bso", x, W) + b
    out_ref = jnp.maximum(lin_ref, 0.0)
    ref = t_ref * out_ref + (1.0 - t_ref) * x

    assert y.shape == ref.shape
    assert jnp.allclose(y, ref, atol=1e-5, rtol=1e-5)

    print("KERNEL_OK")
</pallas_src>

<mosaic_0001>
module attributes {stable_mosaic.version = 11 : i64} {
  func.func @_highway_kernel(%arg0: i32, %arg1: memref<16x32xf32, #tpu.memory_space<vmem>>, %arg2: memref<32x32xf32, #tpu.memory_space<vmem>>, %arg3: memref<1x32xf32, #tpu.memory_space<vmem>>, %arg4: memref<1x32xf32, #tpu.memory_space<vmem>>, %arg5: memref<1xf32, #tpu.memory_space<smem>>, %arg6: memref<16x32xf32, #tpu.memory_space<vmem>>) attributes {dimension_semantics = [#tpu.dimension_semantics<parallel>], iteration_bounds = array<i64: 1>, scalar_prefetch = 0 : i64, scratch_operands = 0 : i64, tpu.core_type = #tpu.core_type<tc>, window_params = [{transform_indices = @transform_0, window_bounds = array<i64: 16, 32>}, {pipeline_mode = #tpu.pipeline_mode<synchronous>, transform_indices = @transform_1, window_bounds = array<i64: 32, 32>}, {pipeline_mode = #tpu.pipeline_mode<synchronous>, transform_indices = @transform_2, window_bounds = array<i64: 1, 32>}, {pipeline_mode = #tpu.pipeline_mode<synchronous>, transform_indices = @transform_3, window_bounds = array<i64: 1, 32>}, {transform_indices = @transform_4, window_bounds = array<i64: 1>}, {transform_indices = @transform_5, window_bounds = array<i64: 16, 32>}]} {
    %c0 = arith.constant 0 : index
    %c0_0 = arith.constant 0 : index
    %0 = vector.load %arg1[%c0, %c0_0] : memref<16x32xf32, #tpu.memory_space<vmem>>, vector<16x32xf32>
    %c0_1 = arith.constant 0 : index
    %c0_2 = arith.constant 0 : index
    %1 = vector.load %arg2[%c0_1, %c0_2] : memref<32x32xf32, #tpu.memory_space<vmem>>, vector<32x32xf32>
    %c0_3 = arith.constant 0 : index
    %c0_4 = arith.constant 0 : index
    %2 = vector.load %arg3[%c0_3, %c0_4] : memref<1x32xf32, #tpu.memory_space<vmem>>, vector<1x32xf32>
    %c0_5 = arith.constant 0 : index
    %c0_6 = arith.constant 0 : index
    %3 = vector.load %arg4[%c0_5, %c0_6] : memref<1x32xf32, #tpu.memory_space<vmem>>, vector<1x32xf32>
    %c0_7 = arith.constant 0 : index
    %4 = memref.load %arg5[%c0_7] : memref<1xf32, #tpu.memory_space<smem>>
    %cst = arith.constant dense<0.000000e+00> : vector<16x32xf32>
    %5 = tpu.matmul %0, %1, %cst {dimension_numbers = #tpu.dot_dimension_numbers<[1], [1], [0], [0], [0, 0, 1, 0], [], []>} : vector<16x32xf32>, vector<32x32xf32>, vector<16x32xf32> -> vector<16x32xf32>
    %6 = vector.broadcast %2 : vector<1x32xf32> to vector<16x32xf32>
    %7 = arith.addf %5, %6 : vector<16x32xf32>
    %cst_8 = arith.constant 0.000000e+00 : f32
    %8 = vector.broadcast %cst_8 : f32 to vector<16x32xf32>
    %9 = arith.maximumf %7, %8 : vector<16x32xf32>
    %10 = vector.broadcast %3 : vector<1x32xf32> to vector<16x32xf32>
    %11 = arith.mulf %0, %10 : vector<16x32xf32>
    %cst_9 = arith.constant dense<0.000000e+00> : vector<16xf32>
    %12 = vector.multi_reduction <add>, %11, %cst_9 [1] : vector<16x32xf32> to vector<16xf32>
    %13 = vector.shape_cast %12 : vector<16xf32> to vector<16x1xf32>
    %14 = vector.broadcast %4 : f32 to vector<16x1xf32>
    %15 = arith.addf %13, %14 : vector<16x1xf32>
    %16 = arith.negf %15 : vector<16x1xf32>
    %17 = math.exp %16 : vector<16x1xf32>
    %cst_10 = arith.constant 1.000000e+00 : f32
    %18 = vector.broadcast %cst_10 : f32 to vector<16x1xf32>
    %19 = arith.addf %18, %17 : vector<16x1xf32>
    %20 = arith.divf %18, %19 : vector<16x1xf32>
    %21 = vector.broadcast %20 : vector<16x1xf32> to vector<16x32xf32>
    %22 = arith.mulf %21, %9 : vector<16x32xf32>
    %cst_11 = arith.constant 1.000000e+00 : f32
    %23 = vector.broadcast %cst_11 : f32 to vector<16x1xf32>
    %24 = arith.subf %23, %20 : vector<16x1xf32>
    %25 = vector.broadcast %24 : vector<16x1xf32> to vector<16x32xf32>
    %26 = arith.mulf %25, %0 : vector<16x32xf32>
    %27 = arith.addf %22, %26 : vector<16x32xf32>
    %c0_12 = arith.constant 0 : index
    %c0_13 = arith.constant 0 : index
    %28 = vector.load %arg6[%c0_12, %c0_13] : memref<16x32xf32, #tpu.memory_space<vmem>>, vector<16x32xf32>
    tpu.vector_store %arg6[%c0_12, %c0_13], %27 {strides = array<i32>} : memref<16x32xf32, #tpu.memory_space<vmem>>, vector<16x32xf32>,
    return
  }
  func.func @transform_0(%arg0: i32) -> (i32, i32) {
    %c0_i32 = arith.constant 0 : i32
    %c0_i32_0 = arith.constant 0 : i32
    return %arg0, %c0_i32 : i32, i32
  }
  func.func @transform_1(%arg0: i32) -> (i32, i32) {
    %c0_i32 = arith.constant 0 : i32
    %c0_i32_0 = arith.constant 0 : i32
    %c0_i32_1 = arith.constant 0 : i32
    return %c0_i32, %c0_i32_0 : i32, i32
  }
  func.func @transform_2(%arg0: i32) -> (i32, i32) {
    %c0_i32 = arith.constant 0 : i32
    %c0_i32_0 = arith.constant 0 : i32
    %c0_i32_1 = arith.constant 0 : i32
    return %c0_i32, %c0_i32_0 : i32, i32
  }
  func.func @transform_3(%arg0: i32) -> (i32, i32) {
    %c0_i32 = arith.constant 0 : i32
    %c0_i32_0 = arith.constant 0 : i32
    %c0_i32_1 = arith.constant 0 : i32
    return %c0_i32, %c0_i32_0 : i32, i32
  }
  func.func @transform_4(%arg0: i32) -> i32 {
    %c0_i32 = arith.constant 0 : i32
    %c0_i32_0 = arith.constant 0 : i32
    return %c0_i32 : i32
  }
  func.func @transform_5(%arg0: i32) -> (i32, i32) {
    %c0_i32 = arith.constant 0 : i32
    %c0_i32_0 = arith.constant 0 : i32
    return %arg0, %c0_i32 : i32, i32
  }
}

</mosaic_0001>

<llo_original>
// kernel: tpu_custom_call.1
$region0: #{tpu_custom_call.1}
  #allocation0 [shape = 'u32[]', space=smem, size = 0x4, offset = 0x4, fixed_abs, tag = 'smem constant byte address 0x4 - core index']
  #allocation1 [shape = 'u32[144,128]{1,0:T(1,128)}', space=vmem, size = 0x12000, scoped, tag = 'internal scratch']
  #allocation2 [shape = 'f32[1]{0:T(128)S(6)}', space=smem, size = 0x200, scoped, tag = 'scoped memory for tpu_custom_call.1']
  %s0 = inlined_call_operand.hbm [shape: f32[16,32], index: 0, kind: input, shape index: {}]
  %s1 = inlined_call_operand.hbm [shape: f32[32,32], index: 1, kind: input, shape index: {}]
  %s2 = inlined_call_operand.vmem [shape: f32[1,32], index: 2, kind: input, shape index: {}]
  %s3 = inlined_call_operand.vmem [shape: f32[1,32], index: 3, kind: input, shape index: {}]
  %s4 = inlined_call_operand.<no memory space> [shape: f32[1], index: 4, kind: input, shape index: {}]
  %s5 = inlined_call_operand.hbm [shape: f32[16,32], index: 5, kind: output, shape index: {}]
  %s6 = sld [smem:[#allocation0]]
  $region38: #{tpu_custom_call.1} parent=0
    _
  %s8 = ssub.s32 1, %s6
  %s9 = scalar_select 0, %s8, %s6
  %10 = sst [smem:[#allocation2]] %s4
  $region1: #{tpu_custom_call.1} parent=0
    #allocation3 [shape = 'u8[8192]{0}', space=vmem, size = 0x2000, scoped, tag = 'input window, operand 0, single buffered']
    #allocation4 [shape = 's32[1]{0}', space=sflag, size = 0x4, scoped, tag = 'scoped memory for tpu_custom_call.1']
    #allocation5 [shape = 's32[1]{0}', space=sflag, size = 0x4, scoped, tag = 'scoped memory for tpu_custom_call.1']
    #allocation6 [shape = 'u8[16384]{0}', space=vmem, size = 0x4000, scoped, tag = 'input window, operand 1, single buffered']
    #allocation7 [shape = 's32[1]{0}', space=sflag, size = 0x4, scoped, tag = 'scoped memory for tpu_custom_call.1']
    #allocation8 [shape = 'u8[8192]{0}', space=vmem, size = 0x2000, scoped, tag = 'output window, operand 0, single buffered']
    %11 = vsyncpa [#allocation4], 0
    %12 = vsyncpa [#allocation7], 0
    %13 = vsyncpa [#allocation5], 0
    // Predicated region
    $region2: #{tpu_custom_call.1} parent=1 // pred_check
      _
    $region3: #{tpu_custom_call.1} parent=1 // pred_check_branch
      %15 = sbr.rel (0) target = $region5
    $region4: #{tpu_custom_call.1} parent=1 // pred_region
      %s17 = ssub.s32 256, 256
      %18 = vsyncadd [#allocation4], %s17
      %s19 = sshll.u32 [#allocation3], 4
      %s20 = int_to_ptr.vmem [resolvable:$true] %s19
      %25 = dma.hbm_to_vmem [thread:$0]  %s0, 256, %s20, [#allocation4], 128, 128, 8
    $region5: #{tpu_custom_call.1} parent=1 // pred_fallthru
      _
    // Predicated region
    $region6: #{tpu_custom_call.1} parent=1 // pred_check
      _
    $region7: #{tpu_custom_call.1} parent=1 // pred_check_branch
      %27 = sbr.rel (0) target = $region9
    $region8: #{tpu_custom_call.1} parent=1 // pred_region
      %s29 = ssub.s32 512, 512
      %30 = vsyncadd [#allocation7], %s29
      %s31 = sshll.u32 [#allocation6], 4
      %s32 = int_to_ptr.vmem [resolvable:$true] %s31
      %37 = dma.hbm_to_vmem [thread:$0]  %s1, 512, %s32, [#allocation7], 128, 128, 8
    $region9: #{tpu_custom_call.1} parent=1 // pred_fallthru
      _
    // Predicated region
    $region10: #{tpu_custom_call.1} parent=1 // pred_check
      _
    $region11: #{tpu_custom_call.1} parent=1 // pred_check_branch
      %39 = sbr.rel (0) target = $region13
    $region12: #{tpu_custom_call.1} parent=1 // pred_region
      _
    $region13: #{tpu_custom_call.1} parent=1 // pred_fallthru
      _
    // Predicated region
    $region14: #{tpu_custom_call.1} parent=1 // pred_check
      _
    $region15: #{tpu_custom_call.1} parent=1 // pred_check_branch
      %41 = sbr.rel (0) target = $region17
    $region16: #{tpu_custom_call.1} parent=1 // pred_region
      _
    $region17: #{tpu_custom_call.1} parent=1 // pred_fallthru
      _
    // Predicated region
    $region18: #{tpu_custom_call.1} parent=1 // pred_check
      _
    $region19: #{tpu_custom_call.1} parent=1 // pred_check_branch
      %43 = sbr.rel (0) target = $region21
    $region20: #{tpu_custom_call.1} parent=1 // pred_region
      _
    $region21: #{tpu_custom_call.1} parent=1 // pred_fallthru
      _
    // Predicated region
    $region22: #{tpu_custom_call.1} parent=1 // pred_check
      _
    $region23: #{tpu_custom_call.1} parent=1 // pred_check_branch
      %45 = sbr.rel (0) target = $region25
    $region24: #{tpu_custom_call.1} parent=1 // pred_region
      %46 = dma.done [#allocation4], 256
    $region25: #{tpu_custom_call.1} parent=1 // pred_fallthru
      _
    // Predicated region
    $region26: #{tpu_custom_call.1} parent=1 // pred_check
      _
    $region27: #{tpu_custom_call.1} parent=1 // pred_check_branch
      %48 = sbr.rel (0) target = $region29
    $region28: #{tpu_custom_call.1} parent=1 // pred_region
      %49 = dma.done [#allocation7], 512
    $region29: #{tpu_custom_call.1} parent=1 // pred_fallthru
      _
    %v50 = vld [vmem:[#allocation3] sm:$0xff]
    %v51 = vld [vmem:[#allocation3 + $0x8] sm:$0xff]
    %v52 = vld [vmem:[#allocation6] sm:$0xff]
    %v53 = vld [vmem:[#allocation6 + $0x8] sm:$0xff]
    %v54 = vld [vmem:[#allocation6 + $0x10] sm:$0xff]
    %v55 = vld [vmem:[#allocation6 + $0x18] sm:$0xff]
    %v56 = vld [vmem:[%s2] sm:$0x1]
    %v57 = vld [vmem:[%s3] sm:$0x1]
    %s58 = sld [smem:[#allocation2]]
    %v60 = vlaneseq
    %v61 = vshrl.u32 %v60, 7
    %v62 = vsub.s32 0, %v61
    %v63 = vrot.slane %v56, %v62
    %vm65 = vcmask 261120
    %v67 = vsel %vm65, %v50, 0
    %v70 = vsel %vm65, %v51, 0
    %v73 = vsel %vm65, %v52, 0
    %v76 = vsel %vm65, %v53, 0
    %v79 = vsel %vm65, %v54, 0
    %v82 = vsel %vm65, %v55, 0
    %84 = vmatprep.subr.mxu0 0.0
    %85 = vmatpush1.xpose.msra.mxu0 0.0
    %86 = vmatprep.subr.mxu0 0.0
    %87 = vmatpush1.xpose.msra.mxu0 0.0
    %88 = vmatprep.subr.mxu0 0.0
    %89 = vmatpush1.xpose.msra.mxu0 0.0
    %90 = vmatprep.subr.mxu0 0.0
    %91 = vmatpush1.xpose.msra.mxu0 0.0
    %92 = vmatprep.subr.mxu0 0.0
    %93 = vmatpush1.xpose.msra.mxu0 0.0
    %94 = vmatprep.subr.mxu0 0.0
    %95 = vmatpush1.xpose.msra.mxu0 0.0
    %96 = vmatprep.subr.mxu0 0.0
    %97 = vmatpush1.xpose.msra.mxu0 0.0
    %98 = vmatprep.subr.mxu0 0.0
    %99 = vmatpush1.xpose.msra.mxu0 0.0
    %100 = vmatprep.subr.mxu0 0.0
    %101 = vmatpush1.xpose.msra.mxu0 0.0
    %102 = vmatprep.subr.mxu0 0.0
    %103 = vmatpush1.xpose.msra.mxu0 0.0
    %104 = vmatprep.subr.mxu0 0.0
    %105 = vmatpush1.xpose.msra.mxu0 0.0
    %106 = vmatprep.subr.mxu0 0.0
    %107 = vmatpush1.xpose.msra.mxu0 0.0
    %108 = vmatprep.subr.mxu0 0.0
    %109 = vmatpush1.xpose.msra.mxu0 %v82
    %110 = vmatprep.subr.mxu0 0.0
    %111 = vmatpush1.xpose.msra.mxu0 %v79
    %112 = vmatprep.subr.mxu0 0.0
    %113 = vmatpush1.xpose.msra.mxu0 %v76
    %114 = vmatprep.subr.mxu0 0.0
    %115 = vmatpush1.xpose.msra.mxu0 %v73
    %116 = vmatprep.subr.mxu0 0.0
    %117 = vmatpush2.xpose.msra.mxu0 0.0
    %118 = vmatprep.subr.mxu0 0.0
    %119 = vmatpush2.xpose.msra.mxu0 0.0
    %120 = vmatprep.subr.mxu0 0.0
    %121 = vmatpush2.xpose.msra.mxu0 0.0
    %122 = vmatprep.subr.mxu0 0.0
    %123 = vmatpush2.xpose.msra.mxu0 0.0
    %124 = vmatprep.subr.mxu0 0.0
    %125 = vmatpush2.xpose.msra.mxu0 0.0
    %126 = vmatprep.subr.mxu0 0.0
    %127 = vmatpush2.xpose.msra.mxu0 0.0
    %128 = vmatprep.subr.mxu0 0.0
    %129 = vmatpush2.xpose.msra.mxu0 0.0
    %130 = vmatprep.subr.mxu0 0.0
    %131 = vmatpush2.xpose.msra.mxu0 0.0
    %132 = vmatprep.subr.mxu0 0.0
    %133 = vmatpush2.xpose.msra.mxu0 0.0
    %134 = vmatprep.subr.mxu0 0.0
    %135 = vmatpush2.xpose.msra.mxu0 0.0
    %136 = vmatprep.subr.mxu0 0.0
    %137 = vmatpush2.xpose.msra.mxu0 0.0
    %138 = vmatprep.subr.mxu0 0.0
    %139 = vmatpush2.xpose.msra.mxu0 0.0
    %140 = vmatprep.subr.mxu0 0.0
    %141 = vmatpush2.xpose.msra.mxu0 0.0
    %142 = vmatprep.subr.mxu0 0.0
    %143 = vmatpush2.xpose.msra.mxu0 0.0
    %144 = vmatprep.subr.mxu0 0.0
    %145 = vmatpush2.xpose.msra.mxu0 0.0
    %146 = vmatprep.subr.mxu0 0.0
    %147 = vmatpush2.xpose.msra.mxu0 0.0
    %148 = vmatprep.mubr.f32.mxu0 0.0
    %149 = vmatmul.mubr.f32.gmra.mxu0 %v67
    %v150 = vpop.f32.mrf.mxu0
    %v151 = vadd.f32 %v63, %v150
    %v152 = vpop.f32.mrf.mxu0
    %153 = vmatprep.mubr.f32.mxu0 0.0
    %154 = vmatmul.mubr.f32.gmra.mxu0 %v70
    %v155 = vpop.f32.mrf.mxu0
    %v156 = vadd.f32 %v63, %v155
    %v157 = vpop.f32.mrf.mxu0
    %158 = vdwg.mxu0
    %v159 = vmax.f32 %v151, 0.0
    %v160 = vmax.f32 %v156, 0.0
    %v162 = vlaneseq
    %v163 = vshrl.u32 %v162, 7
    %v164 = vsub.s32 0, %v163
    %v165 = vrot.slane %v57, %v164
    %v167 = vmul.f32 %v50, %v165
    %v168 = vmul.f32 %v51, %v165
    %v169 = vsel %vm65, %v167, 0.0
    %170 = vadd.xlane.f32.xlu0 %v169
    %v171 = vpop.xlane.xlu0 %170
    %v172 = vsel %vm65, %v168, 0.0
    %173 = vadd.xlane.f32.xlu0 %v172
    %v174 = vpop.xlane.xlu0 %173
    %v175 = vstv %s58
    %v176 = vadd.f32 %v171, %v175
    %v177 = vadd.f32 %v174, %v175
    %v178 = vxor.u32 %v176, 2147483648
    %v179 = vxor.u32 %v177, 2147483648
    %v180 = vmul.f32 %v178, 1.442695
    %v181 = vpow.pop %v180
    %v182 = vmul.f32 %v179, 1.442695
    %v183 = vpow.pop %v182
    %v184 = vadd.f32 %v181, 1.0
    %v185 = vadd.f32 %v183, 1.0
    %v186 = vrcp.pop %v184
    %v187 = vmul.f32 1.0, %v186
    %v188 = vrcp.pop %v185
    %v189 = vmul.f32 1.0, %v188
    %v190 = vmul.f32 %v187, %v159
    %v191 = vmul.f32 %v189, %v160
    %v192 = vsub.f32 1.0, %v187
    %v193 = vsub.f32 1.0, %v189
    %v194 = vmul.f32 %v192, %v50
    %v195 = vmul.f32 %v193, %v51
    %v196 = vadd.f32 %v190, %v194
    %v197 = vadd.f32 %v191, %v195
    %198 = vst.msk [vmem:[#allocation8] sm:$0xff] %vm65, %v196
    %199 = vst.msk [vmem:[#allocation8 + $0x8] sm:$0xff] %vm65, %v197
    // Predicated region
    $region30: #{tpu_custom_call.1} parent=1 // pred_check
      _
    $region31: #{tpu_custom_call.1} parent=1 // pred_check_branch
      %201 = sbr.rel (0) target = $region33
    $region32: #{tpu_custom_call.1} parent=1 // pred_region
      %s203 = ssub.s32 256, 256
      %204 = vsyncadd [#allocation5], %s203
      %s205 = sshll.u32 [#allocation8], 4
      %s206 = int_to_ptr.vmem [resolvable:$true] %s205
      %211 = dma.vmem_to_hbm [thread:$0]  %s206, 256, %s5, [#allocation5], 128, 128, 8
    $region33: #{tpu_custom_call.1} parent=1 // pred_fallthru
      _
    // Predicated region
    $region34: #{tpu_custom_call.1} parent=1 // pred_check
      _
    $region35: #{tpu_custom_call.1} parent=1 // pred_check_branch
      %213 = sbr.rel (0) target = $region37
    $region36: #{tpu_custom_call.1} parent=1 // pred_region
      %214 = dma.done [#allocation5], 256
    $region37: #{tpu_custom_call.1} parent=1 // pred_fallthru
      _
    %215 = vsyncpa [#allocation4], 1
    %216 = vsyncpa [#allocation7], 1
    %217 = vsyncpa [#allocation5], 1

</llo_original>
